<compile_context>
chip_gen: v6e
topology: v6e:2x2x1
jax: 0.10.0
libtpu: 0.0.40
codegen_flags: <defaults>
</compile_context>

<pallas_src>
import functools
from types import SimpleNamespace

import jax
import jax.numpy as jnp
from jax.experimental import pallas as pl
from jax.experimental.pallas import tpu as pltpu


# Max lane-chunk per grid step (f32 elements). Multiple of 128.
_MAX_CHUNK = 128 * 1024


def _int_pow(x, power):
    """x**power for the small static exponents in ptable (3, 2, 1, 0)."""
    p = int(power)
    if float(power) == float(p) and p >= 0:
        if p == 0:
            return jnp.ones_like(x)
        y = x
        for _ in range(p - 1):
            y = y * x
        return y
    return jnp.power(x, power)  # fallback (non-integer exponent)


# ---------------------------------------------------------------------------
# Pallas kernel: gating + per-window normalization + redistribution
# ---------------------------------------------------------------------------
def apool_kernel(ff_ref, a_ref, out_ref, *, power):
    # ff_ref : (k*k, T)  window-unfolded activations (lane-dense flat pixels)
    # a_ref  : (1,   T)  attention on the pooled output grid
    # out_ref: (k*k, T)  attention redistributed to the input grid
    ff = ff_ref[...].astype(jnp.float32)           # f32 math (bf16-safe)
    g = _int_pow(ff, power)                        # gating (scale cancels)
    denom = jnp.sum(g, axis=0, keepdims=True)      # per-window sum  (1, T)
    a = a_ref[...].astype(jnp.float32)             # (1, T)
    # single select; 1/denom runs on the EUP, inf/nan in the zero-denominator
    # branch is discarded by the where (window with zero total gating gets 0,
    # i.e. its attention mass is dropped, matching the reference semantics).
    contrib = jnp.where(denom == 0.0, 0.0,
                        a * pl.reciprocal(denom, approx=False))
    out_ref[...] = (g * contrib).astype(out_ref.dtype)


# ---------------------------------------------------------------------------
# apool wrapper (glue reshapes in plain JAX, hot path in the kernel)
# ---------------------------------------------------------------------------
def apool(ff_h, a, ptable, ptable_offset, second_stage,
          kernel_size, stride, padding, dilation):
    k = int(kernel_size[1])
    s = int(stride[1])
    p = int(padding[1])
    d = int(dilation[1])
    # TODO(synk): general overlapping / padded / dilated pooling not supported.
    assert s == k and p == 0 and d == 1, "only non-overlapping, unpadded pooling"

    B, C, H, W = ff_h.shape
    Ho, Wo = H // k, W // k
    assert a.shape == (B, C, Ho, Wo)

    row = int(ptable_offset) + int(second_stage)
    power = float(ptable[row][1])   # scale = ptable[row][0] cancels (>0)

    BC = B * C
    N = BC * Ho * Wo

    # Unfold pooling windows into a window-position-major, lane-dense layout:
    # (B,C,H,W) -> (k, k, BC, Ho, Wo) -> (k*k, N).  Index n = (bc*Ho+ho)*Wo+wo.
    ff_win = (ff_h.reshape(BC, Ho, k, Wo, k)
                  .transpose(2, 4, 0, 1, 3)
                  .reshape(k * k, N))
    a_flat = a.reshape(1, N)

    # Lane-chunk: either the whole flat axis (block == full dim) or a large
    # multiple-of-128 chunk; last (partial) block is masked by Pallas.
    T = N if N <= _MAX_CHUNK else _MAX_CHUNK
    grid = (pl.cdiv(N, T),)

    kern = functools.partial(apool_kernel, power=power)

    itemsize = jnp.dtype(ff_h.dtype).itemsize
    flops = int(N * k * k * (max(int(power), 1) + 2))
    bytes_accessed = int(2 * k * k * N * itemsize + N * itemsize)

    out_win = pl.pallas_call(
        kern,
        out_shape=jax.ShapeDtypeStruct((k * k, N), ff_h.dtype),
        grid_spec=pltpu.PrefetchScalarGridSpec(
            num_scalar_prefetch=0,
            grid=grid,
            in_specs=[
                pl.BlockSpec((k * k, T), lambda i: (0, i)),
                pl.BlockSpec((1, T), lambda i: (0, i)),
            ],
            out_specs=pl.BlockSpec((k * k, T), lambda i: (0, i)),
        ),
        compiler_params=pltpu.CompilerParams(
            dimension_semantics=("parallel",),   # shards blocks on v7x's 2 TCs
            vmem_limit_bytes=32 * 1024 * 1024,   # fits v7x (64 MiB phys) too
            allow_input_fusion=[True, True],     # let XLA fuse the unfold in
        ),
        cost_estimate=pl.CostEstimate(
            flops=flops, transcendentals=0, bytes_accessed=bytes_accessed),
    )(ff_win, a_flat)

    # Fold windows back: (k*k, N) -> (B, C, H, W).
    out = (out_win.reshape(k, k, BC, Ho, Wo)
                  .transpose(2, 3, 0, 4, 1)
                  .reshape(B, C, H, W))
    return out


# ---------------------------------------------------------------------------
# APool module (mirrors the PyTorch module's __init__ bookkeeping)
# ---------------------------------------------------------------------------
class APool:
    def __init__(self, ff_pool):
        self.kernel_size = (0,) + (ff_pool.kernel_size,) * 2
        self.stride = (1,) + (ff_pool.stride,) * 2
        self.padding = (1,) + (ff_pool.padding,) * 2
        self.dilation = (1,) + (ff_pool.dilation,) * 2
        self.ptable = ((1.0, 3.0), (1.0, 2.0), (1.0, 1.0),
                       (1.0, 0.0), (1.0 / 2.0, 0.0), (1.0 / 5.0, 0.0))
        self.ptable_offset = 0
        self.second_stage = 0

    def __call__(self, ff_h, a):
        return apool(ff_h, a, self.ptable, self.ptable_offset,
                     self.second_stage, self.kernel_size, self.stride,
                     self.padding, self.dilation)


# ---------------------------------------------------------------------------
# Pure-JAX reference (for a correctness check)
# ---------------------------------------------------------------------------
def apool_ref(ff_h, a, scale, power, k):
    B, C, H, W = ff_h.shape
    Ho, Wo = H // k, W // k
    g = scale * jnp.power(ff_h, power) if power != 0 else scale * jnp.ones_like(ff_h)
    g_win = g.reshape(B, C, Ho, k, Wo, k)
    denom = g_win.sum(axis=(3, 5))
    safe = jnp.where(denom == 0.0, 1.0, denom)
    contrib = jnp.where(denom == 0.0, 0.0, a / safe)
    out = g_win * contrib[:, :, :, None, :, None]
    return out.reshape(B, C, H, W)


if __name__ == "__main__":
    key = jax.random.PRNGKey(0)
    k1, k2 = jax.random.split(key)

    B, C, H, W, K = 2, 4, 16, 16, 2
    # post-ReLU-style nonnegative activations feeding a MaxPool2d(2)
    ff_h = jax.random.uniform(k1, (B, C, H, W), dtype=jnp.float32)
    a = jax.random.uniform(k2, (B, C, H // K, W // K), dtype=jnp.float32)

    ff_pool = SimpleNamespace(kernel_size=K, stride=K, padding=0, dilation=1)
    mod = APool(ff_pool)

    out = mod(ff_h, a)
    out = jax.block_until_ready(out)

    scale, power = mod.ptable[mod.ptable_offset + mod.second_stage]
    ref = apool_ref(ff_h, a, scale, power, K)
    assert out.shape == (B, C, H, W)
    assert jnp.allclose(out, ref, atol=1e-5, rtol=1e-5)

    print("KERNEL_OK")
</pallas_src>

<mosaic_0001>
module attributes {stable_mosaic.version = 11 : i64} {
  func.func @apool_kernel(%arg0: i32, %arg1: memref<4x512xf32, #tpu.memory_space<vmem>>, %arg2: memref<1x512xf32, #tpu.memory_space<vmem>>, %arg3: memref<4x512xf32, #tpu.memory_space<vmem>>) attributes {dimension_semantics = [#tpu.dimension_semantics<parallel>], iteration_bounds = array<i64: 1>, scalar_prefetch = 0 : i64, scratch_operands = 0 : i64, tpu.core_type = #tpu.core_type<tc>, window_params = [{transform_indices = @transform_0, window_bounds = array<i64: 4, 512>}, {transform_indices = @transform_1, window_bounds = array<i64: 1, 512>}, {transform_indices = @transform_2, window_bounds = array<i64: 4, 512>}]} {
    %c0 = arith.constant 0 : index
    %c0_0 = arith.constant 0 : index
    %0 = vector.load %arg1[%c0, %c0_0] : memref<4x512xf32, #tpu.memory_space<vmem>>, vector<4x512xf32>
    %1 = arith.mulf %0, %0 : vector<4x512xf32>
    %2 = arith.mulf %1, %0 : vector<4x512xf32>
    %cst = arith.constant dense<0.000000e+00> : vector<512xf32>
    %3 = vector.multi_reduction <add>, %2, %cst [0] : vector<4x512xf32> to vector<512xf32>
    %4 = vector.shape_cast %3 : vector<512xf32> to vector<1x512xf32>
    %c0_1 = arith.constant 0 : index
    %c0_2 = arith.constant 0 : index
    %5 = vector.load %arg2[%c0_1, %c0_2] : memref<1x512xf32, #tpu.memory_space<vmem>>, vector<1x512xf32>
    %cst_3 = arith.constant 0.000000e+00 : f32
    %6 = vector.broadcast %cst_3 : f32 to vector<1x512xf32>
    %7 = arith.cmpf oeq, %4, %6 : vector<1x512xf32>
    %8 = tpu.reciprocal %4 : vector<1x512xf32> -> vector<1x512xf32>
    %9 = arith.mulf %5, %8 : vector<1x512xf32>
    %cst_4 = arith.constant 0.000000e+00 : f32
    %10 = vector.broadcast %cst_4 : f32 to vector<1x512xf32>
    %11 = arith.select %7, %10, %9 : vector<1x512xi1>, vector<1x512xf32>
    %12 = vector.broadcast %11 : vector<1x512xf32> to vector<4x512xf32>
    %13 = arith.mulf %2, %12 : vector<4x512xf32>
    %c0_5 = arith.constant 0 : index
    %c0_6 = arith.constant 0 : index
    %14 = vector.load %arg3[%c0_5, %c0_6] : memref<4x512xf32, #tpu.memory_space<vmem>>, vector<4x512xf32>
    tpu.vector_store %arg3[%c0_5, %c0_6], %13 {strides = array<i32>} : memref<4x512xf32, #tpu.memory_space<vmem>>, vector<4x512xf32>,
    return
  }
  func.func @transform_0(%arg0: i32) -> (i32, i32) {
    %c0_i32 = arith.constant 0 : i32
    %c0_i32_0 = arith.constant 0 : i32
    return %c0_i32, %arg0 : i32, i32
  }
  func.func @transform_1(%arg0: i32) -> (i32, i32) {
    %c0_i32 = arith.constant 0 : i32
    %c0_i32_0 = arith.constant 0 : i32
    return %c0_i32, %arg0 : i32, i32
  }
  func.func @transform_2(%arg0: i32) -> (i32, i32) {
    %c0_i32 = arith.constant 0 : i32
    %c0_i32_0 = arith.constant 0 : i32
    return %c0_i32, %arg0 : i32, i32
  }
}

</mosaic_0001>

<llo_original>
// kernel: tpu_custom_call.1
$region0: #{tpu_custom_call.1}
  #allocation0 [shape = 'u32[]', space=smem, size = 0x4, offset = 0x4, fixed_abs, tag = 'smem constant byte address 0x4 - core index']
  #allocation1 [shape = 'u32[144,128]{1,0:T(1,128)}', space=vmem, size = 0x12000, scoped, tag = 'internal scratch']
  %s0 = inlined_call_operand.hbm [shape: f32[4,512], index: 0, kind: input, shape index: {}]
  %s1 = inlined_call_operand.hbm [shape: f32[1,512], index: 1, kind: input, shape index: {}]
  %s2 = inlined_call_operand.hbm [shape: f32[4,512], index: 2, kind: output, shape index: {}]
  %s3 = sld [smem:[#allocation0]]
  $region26: #{tpu_custom_call.1} parent=0
    _
  %s5 = ssub.s32 1, %s3
  %s6 = scalar_select 0, %s5, %s3
  $region1: #{tpu_custom_call.1} parent=0
    #allocation2 [shape = 'u8[8192]{0}', space=vmem, size = 0x2000, scoped, tag = 'input window, operand 0, single buffered']
    #allocation3 [shape = 's32[1]{0}', space=sflag, size = 0x4, scoped, tag = 'scoped memory for tpu_custom_call.1']
    #allocation4 [shape = 's32[1]{0}', space=sflag, size = 0x4, scoped, tag = 'scoped memory for tpu_custom_call.1']
    #allocation5 [shape = 'u8[2048]{0}', space=vmem, size = 0x800, scoped, tag = 'input window, operand 1, single buffered']
    #allocation6 [shape = 's32[1]{0}', space=sflag, size = 0x4, scoped, tag = 'scoped memory for tpu_custom_call.1']
    #allocation7 [shape = 'u8[8192]{0}', space=vmem, size = 0x2000, scoped, tag = 'output window, operand 0, single buffered']
    %7 = vsyncpa [#allocation3], 0
    %8 = vsyncpa [#allocation6], 0
    %9 = vsyncpa [#allocation4], 0
    // Predicated region
    $region2: #{tpu_custom_call.1} parent=1 // pred_check
      _
    $region3: #{tpu_custom_call.1} parent=1 // pred_check_branch
      %11 = sbr.rel (0) target = $region5
    $region4: #{tpu_custom_call.1} parent=1 // pred_region
      %s13 = ssub.s32 256, 256
      %14 = vsyncadd [#allocation3], %s13
      %s16 = sshll.u32 [#allocation2], 4
      %s17 = int_to_ptr.vmem [resolvable:$true] %s16
      %19 = dma.hbm_to_vmem [thread:$0]  %s0, 256, %s17, [#allocation3]
    $region5: #{tpu_custom_call.1} parent=1 // pred_fallthru
      _
    // Predicated region
    $region6: #{tpu_custom_call.1} parent=1 // pred_check
      _
    $region7: #{tpu_custom_call.1} parent=1 // pred_check_branch
      %21 = sbr.rel (0) target = $region9
    $region8: #{tpu_custom_call.1} parent=1 // pred_region
      %s23 = ssub.s32 64, 64
      %24 = vsyncadd [#allocation6], %s23
      %s26 = sshll.u32 [#allocation5], 4
      %s27 = int_to_ptr.vmem [resolvable:$true] %s26
      %29 = dma.hbm_to_vmem [thread:$0]  %s1, 64, %s27, [#allocation6]
    $region9: #{tpu_custom_call.1} parent=1 // pred_fallthru
      _
    // Predicated region
    $region10: #{tpu_custom_call.1} parent=1 // pred_check
      _
    $region11: #{tpu_custom_call.1} parent=1 // pred_check_branch
      %31 = sbr.rel (0) target = $region13
    $region12: #{tpu_custom_call.1} parent=1 // pred_region
      %32 = dma.done [#allocation3], 256
    $region13: #{tpu_custom_call.1} parent=1 // pred_fallthru
      _
    // Predicated region
    $region14: #{tpu_custom_call.1} parent=1 // pred_check
      _
    $region15: #{tpu_custom_call.1} parent=1 // pred_check_branch
      %34 = sbr.rel (0) target = $region17
    $region16: #{tpu_custom_call.1} parent=1 // pred_region
      %35 = dma.done [#allocation6], 64
    $region17: #{tpu_custom_call.1} parent=1 // pred_fallthru
      _
    %v36 = vld [vmem:[#allocation2] sm:$0xff]
    %v37 = vld [vmem:[#allocation2 + $0x8] sm:$0xff]
    %v38 = vmul.f32 %v36, %v36
    %v39 = vmul.f32 %v37, %v37
    %v40 = vmul.f32 %v38, %v36
    %v41 = vmul.f32 %v39, %v37
    %v44 = vcombine.high %v40, %v40
    %v45 = vcombine.high %v41, %v41
    %vm48 = vcmask 1043456
    %v49 = vsel %vm48, %v40, 0.0
    %v50 = vrot.slane %v49, 4
    %v51 = vadd.f32 %v49, %v50
    %v52 = vrot.slane %v51, 2
    %v53 = vadd.f32 %v51, %v52
    %v54 = vrot.slane %v53, 1
    %v55 = vadd.f32 %v53, %v54
    %v56 = vsel %vm48, %v44, 0.0
    %v57 = vrot.slane %v56, 4
    %v58 = vadd.f32 %v56, %v57
    %v59 = vrot.slane %v58, 2
    %v60 = vadd.f32 %v58, %v59
    %v61 = vrot.slane %v60, 1
    %v62 = vadd.f32 %v60, %v61
    %v63 = vsel %vm48, %v41, 0.0
    %v64 = vrot.slane %v63, 4
    %v65 = vadd.f32 %v63, %v64
    %v66 = vrot.slane %v65, 2
    %v67 = vadd.f32 %v65, %v66
    %v68 = vrot.slane %v67, 1
    %v69 = vadd.f32 %v67, %v68
    %v70 = vsel %vm48, %v45, 0.0
    %v71 = vrot.slane %v70, 4
    %v72 = vadd.f32 %v70, %v71
    %v73 = vrot.slane %v72, 2
    %v74 = vadd.f32 %v72, %v73
    %v75 = vrot.slane %v74, 1
    %v76 = vadd.f32 %v74, %v75
    %v77 = vld [vmem:[#allocation5] sm:$0xf]
    %vm78 = vcmp.eq.f32.partialorder %v55, 0.0
    %vm79 = vcmp.eq.f32.partialorder %v62, 0.0
    %vm80 = vcmp.eq.f32.partialorder %v69, 0.0
    %vm81 = vcmp.eq.f32.partialorder %v76, 0.0
    %v82 = vrcp.pop %v55
    %v83 = vrcp.pop %v62
    %v84 = vrcp.pop %v69
    %v85 = vrcp.pop %v76
    %v90 = vcombine.low %v82, %v83
    %v91 = vcombine.low %v84, %v85
    %v93 = vunpack.c.l.s4 1966171168
    %v94 = vunpack.c.0.s8 %v93
    %v95 = vlaneseq
    %v96 = vshrl.u32 %v95, 7
    %v97 = vsub.s32 %v94, %v96
    %v98 = vrot.slane %v90, %v97
    %v100 = vunpack.c.l.s4 1966171168
    %v101 = vunpack.c.0.s8 %v100
    %v102 = vlaneseq
    %v103 = vshrl.u32 %v102, 7
    %v104 = vsub.s32 %v101, %v103
    %v105 = vrot.slane %v91, %v104
    %v106 = vcombine.low %v98, %v105
    %v108 = vunpack.c.l.s4 1966171168
    %v109 = vunpack.c.0.s8 %v108
    %v110 = vlaneseq
    %v111 = vshrl.u32 %v110, 7
    %v112 = vsub.s32 %v109, %v111
    %v113 = vrot.slane %v106, %v112
    %v115 = vmul.f32 %v77, %v113
    %v117 = vlaneseq
    %v118 = vshrl.u32 %v117, 7
    %v119 = vsub.s32 0, %v118
    %v120 = vrot.slane %v115, %v119
    %v121 = vlaneseq
    %v122 = vshrl.u32 %v121, 7
    %v123 = vsub.s32 1, %v122
    %v124 = vrot.slane %v115, %v123
    %v125 = vlaneseq
    %v126 = vshrl.u32 %v125, 7
    %v127 = vsub.s32 2, %v126
    %v128 = vrot.slane %v115, %v127
    %v129 = vlaneseq
    %v130 = vshrl.u32 %v129, 7
    %v131 = vsub.s32 3, %v130
    %v132 = vrot.slane %v115, %v131
    %v137 = vsel %vm78, 0.0, %v120
    %v138 = vsel %vm79, 0.0, %v124
    %v139 = vsel %vm80, 0.0, %v128
    %v140 = vsel %vm81, 0.0, %v132
    %v141 = vlaneseq
    %v142 = vshrl.u32 %v141, 7
    %v143 = vsub.s32 0, %v142
    %v144 = vrot.slane %v137, %v143
    %v145 = vlaneseq
    %v146 = vshrl.u32 %v145, 7
    %v147 = vsub.s32 0, %v146
    %v148 = vrot.slane %v138, %v147
    %v149 = vlaneseq
    %v150 = vshrl.u32 %v149, 7
    %v151 = vsub.s32 0, %v150
    %v152 = vrot.slane %v139, %v151
    %v153 = vlaneseq
    %v154 = vshrl.u32 %v153, 7
    %v155 = vsub.s32 0, %v154
    %v156 = vrot.slane %v140, %v155
    %v161 = vcombine.low %v144, %v148
    %v162 = vcombine.low %v152, %v156
    %v165 = vmul.f32 %v40, %v161
    %v166 = vmul.f32 %v41, %v162
    %167 = vst [vmem:[#allocation7] sm:$0xff] %v165
    %168 = vst [vmem:[#allocation7 + $0x8] sm:$0xff] %v166
    // Predicated region
    $region18: #{tpu_custom_call.1} parent=1 // pred_check
      _
    $region19: #{tpu_custom_call.1} parent=1 // pred_check_branch
      %170 = sbr.rel (0) target = $region21
    $region20: #{tpu_custom_call.1} parent=1 // pred_region
      %s172 = ssub.s32 256, 256
      %173 = vsyncadd [#allocation4], %s172
      %s175 = sshll.u32 [#allocation7], 4
      %s176 = int_to_ptr.vmem [resolvable:$true] %s175
      %178 = dma.vmem_to_hbm [thread:$0]  %s176, 256, %s2, [#allocation4]
    $region21: #{tpu_custom_call.1} parent=1 // pred_fallthru
      _
    // Predicated region
    $region22: #{tpu_custom_call.1} parent=1 // pred_check
      _
    $region23: #{tpu_custom_call.1} parent=1 // pred_check_branch
      %180 = sbr.rel (0) target = $region25
    $region24: #{tpu_custom_call.1} parent=1 // pred_region
      %181 = dma.done [#allocation4], 256
    $region25: #{tpu_custom_call.1} parent=1 // pred_fallthru
      _
    %182 = vsyncpa [#allocation3], 1
    %183 = vsyncpa [#allocation6], 1
    %184 = vsyncpa [#allocation4], 1

</llo_original>
